<compile_context>
chip_gen: v7x
topology: tpu7x:2x2x1
jax: 0.10.0
libtpu: 0.0.40
codegen_flags: <defaults>
</compile_context>

<pallas_src>
import jax
import jax.numpy as jnp
from jax.experimental import pallas as pl
from jax.experimental.pallas import tpu as pltpu


def _round_up(x: int, m: int) -> int:
    return (x + m - 1) // m * m


def _mlp_kernel(x_ref, w1_ref, b1_ref, w2_ref, b2_ref, o_ref):
    # One batch tile per grid step; weights/biases are resident (same block
    # every step).  Feature dims are the true (tiny) dims -- Mosaic pads the
    # contraction internally, so no wrapper-side byte padding is needed.
    x = x_ref[...]                                                    # (tb, in)
    h = jnp.dot(x, w1_ref[...],
                preferred_element_type=jnp.float32) + b1_ref[...]     # (tb, mid)
    h = jax.nn.sigmoid(h)                                             # EUP
    y = jnp.dot(h, w2_ref[...],
                preferred_element_type=jnp.float32) + b2_ref[...]     # (tb, out)
    o_ref[...] = jax.nn.sigmoid(y).astype(o_ref.dtype)


def n2_layer_perceptron(x, w1, b1, w2, b2, *, batch_tile: int = 1024):
    """x: (B, in) f32; w1: (in, mid); b1: (mid,) or (1, mid);
    w2: (mid, out); b2: (out,) or (1, out).  Returns (B, out) f32."""
    B, in_dim = x.shape
    mid_dim = w1.shape[1]
    out_dim = w2.shape[1]
    SUBLANE = 8
    f32 = jnp.float32

    x = x.astype(f32)
    w1 = w1.astype(f32)
    b1 = jnp.reshape(b1, (1, mid_dim)).astype(f32)
    w2 = w2.astype(f32)
    b2 = jnp.reshape(b2, (1, out_dim)).astype(f32)

    # Pad the batch only to a sublane multiple (usually a no-op).
    B8 = _round_up(B, SUBLANE)
    if B8 != B:
        x = jnp.pad(x, ((0, B8 - B), (0, 0)))

    # Batch tile: sublane-aligned, capped at batch_tile, and sized so that on
    # v7x both TensorCores get work for small/medium batches.  The last tile
    # may be ragged; Pallas masks the out-of-bounds rows on write.
    per_core = _round_up(pl.cdiv(B8, 2), SUBLANE)
    tb = max(SUBLANE, min(_round_up(batch_tile, SUBLANE), per_core))
    grid = (pl.cdiv(B8, tb),)

    out = pl.pallas_call(
        _mlp_kernel,
        out_shape=jax.ShapeDtypeStruct((B8, out_dim), f32),
        grid=grid,
        in_specs=[
            pl.BlockSpec((tb, in_dim), lambda i: (i, 0)),        # x: batch-tiled
            pl.BlockSpec((in_dim, mid_dim), lambda i: (0, 0)),   # W1: resident
            pl.BlockSpec((1, mid_dim), lambda i: (0, 0)),        # b1: resident
            pl.BlockSpec((mid_dim, out_dim), lambda i: (0, 0)),  # W2: resident
            pl.BlockSpec((1, out_dim), lambda i: (0, 0)),        # b2: resident
        ],
        out_specs=pl.BlockSpec((tb, out_dim), lambda i: (i, 0)),
        compiler_params=pltpu.CompilerParams(
            # Batch axis is embarrassingly parallel -> megacore on v7x.
            dimension_semantics=("parallel",),
            vmem_limit_bytes=32 * 1024 * 1024,
        ),
    )(x, w1, b1, w2, b2)

    return out[:B] if B8 != B else out


def _reference(x, w1, b1, w2, b2):
    h = jax.nn.sigmoid(jnp.dot(x, w1) + jnp.reshape(b1, (1, -1)))
    return jax.nn.sigmoid(jnp.dot(h, w2) + jnp.reshape(b2, (1, -1)))


if __name__ == "__main__":
    # Module defaults: input=2, middle=3, output=1 (XOR-style perceptron).
    in_dim, mid_dim, out_dim = 2, 3, 1
    batch = 8

    key = jax.random.PRNGKey(0)
    kx, k1, kb1, k2, kb2 = jax.random.split(key, 5)

    # PyTorch stores Linear weight as (out, in); we hold it pre-transposed
    # as (in, out) so the kernel computes plain x @ W.
    x = jax.random.normal(kx, (batch, in_dim), dtype=jnp.float32)
    w1 = jax.random.normal(k1, (in_dim, mid_dim), dtype=jnp.float32) * 0.5
    b1 = jax.random.normal(kb1, (1, mid_dim), dtype=jnp.float32) * 0.1
    w2 = jax.random.normal(k2, (mid_dim, out_dim), dtype=jnp.float32) * 0.5
    b2 = jax.random.normal(kb2, (1, out_dim), dtype=jnp.float32) * 0.1

    run = jax.jit(n2_layer_perceptron)
    out = jax.block_until_ready(run(x, w1, b1, w2, b2))
    ref = _reference(x, w1, b1, w2, b2)
    assert out.shape == (batch, out_dim), out.shape
    assert jnp.allclose(out, ref, atol=1e-4, rtol=1e-3), (
        float(jnp.max(jnp.abs(out - ref))))

    # Second check: a larger batch that exercises multiple grid steps and a
    # ragged last tile (200 rows, tb=104 -> grid of 2, 8 masked rows).
    xb = jax.random.normal(kx, (200, in_dim), dtype=jnp.float32)
    outb = jax.block_until_ready(run(xb, w1, b1, w2, b2))
    refb = _reference(xb, w1, b1, w2, b2)
    assert outb.shape == (200, out_dim), outb.shape
    assert jnp.allclose(outb, refb, atol=1e-4, rtol=1e-3), (
        float(jnp.max(jnp.abs(outb - refb))))

    print("KERNEL_OK")
</pallas_src>

<mosaic_0001>
module attributes {stable_mosaic.version = 11 : i64} {
  func.func @_mlp_kernel(%arg0: i32, %arg1: memref<8x2xf32, #tpu.memory_space<vmem>>, %arg2: memref<2x3xf32, #tpu.memory_space<vmem>>, %arg3: memref<1x3xf32, #tpu.memory_space<vmem>>, %arg4: memref<3x1xf32, #tpu.memory_space<vmem>>, %arg5: memref<1x1xf32, #tpu.memory_space<vmem>>, %arg6: memref<8x1xf32, #tpu.memory_space<vmem>>) attributes {dimension_semantics = [#tpu.dimension_semantics<parallel>], iteration_bounds = array<i64: 1>, scalar_prefetch = 0 : i64, scratch_operands = 0 : i64, tpu.core_type = #tpu.core_type<tc>, window_params = [{transform_indices = @transform_0, window_bounds = array<i64: 8, 2>}, {pipeline_mode = #tpu.pipeline_mode<synchronous>, transform_indices = @transform_1, window_bounds = array<i64: 2, 3>}, {pipeline_mode = #tpu.pipeline_mode<synchronous>, transform_indices = @transform_2, window_bounds = array<i64: 1, 3>}, {pipeline_mode = #tpu.pipeline_mode<synchronous>, transform_indices = @transform_3, window_bounds = array<i64: 3, 1>}, {pipeline_mode = #tpu.pipeline_mode<synchronous>, transform_indices = @transform_4, window_bounds = array<i64: 1, 1>}, {transform_indices = @transform_5, window_bounds = array<i64: 8, 1>}]} {
    %c0 = arith.constant 0 : index
    %c0_0 = arith.constant 0 : index
    %0 = vector.load %arg1[%c0, %c0_0] : memref<8x2xf32, #tpu.memory_space<vmem>>, vector<8x2xf32>
    %c0_1 = arith.constant 0 : index
    %c0_2 = arith.constant 0 : index
    %1 = vector.load %arg2[%c0_1, %c0_2] : memref<2x3xf32, #tpu.memory_space<vmem>>, vector<2x3xf32>
    %cst = arith.constant dense<0.000000e+00> : vector<8x3xf32>
    %2 = tpu.matmul %0, %1, %cst {dimension_numbers = #tpu.dot_dimension_numbers<[1], [0], [0], [1], [0, 0, 1, 1], [], []>} : vector<8x2xf32>, vector<2x3xf32>, vector<8x3xf32> -> vector<8x3xf32>
    %c0_3 = arith.constant 0 : index
    %c0_4 = arith.constant 0 : index
    %3 = vector.load %arg3[%c0_3, %c0_4] : memref<1x3xf32, #tpu.memory_space<vmem>>, vector<1x3xf32>
    %4 = vector.broadcast %3 : vector<1x3xf32> to vector<8x3xf32>
    %5 = arith.addf %2, %4 : vector<8x3xf32>
    %6 = arith.negf %5 : vector<8x3xf32>
    %7 = math.exp %6 : vector<8x3xf32>
    %cst_5 = arith.constant 1.000000e+00 : f32
    %8 = vector.broadcast %cst_5 : f32 to vector<8x3xf32>
    %9 = arith.addf %8, %7 : vector<8x3xf32>
    %10 = arith.divf %8, %9 : vector<8x3xf32>
    %c0_6 = arith.constant 0 : index
    %c0_7 = arith.constant 0 : index
    %11 = vector.load %arg4[%c0_6, %c0_7] : memref<3x1xf32, #tpu.memory_space<vmem>>, vector<3x1xf32>
    %cst_8 = arith.constant dense<0.000000e+00> : vector<8x1xf32>
    %12 = tpu.matmul %10, %11, %cst_8 {dimension_numbers = #tpu.dot_dimension_numbers<[1], [0], [0], [1], [0, 0, 1, 1], [], []>} : vector<8x3xf32>, vector<3x1xf32>, vector<8x1xf32> -> vector<8x1xf32>
    %c0_9 = arith.constant 0 : index
    %c0_10 = arith.constant 0 : index
    %13 = vector.load %arg5[%c0_9, %c0_10] : memref<1x1xf32, #tpu.memory_space<vmem>>, vector<1x1xf32>
    %14 = vector.broadcast %13 : vector<1x1xf32> to vector<8x1xf32>
    %15 = arith.addf %12, %14 : vector<8x1xf32>
    %16 = arith.negf %15 : vector<8x1xf32>
    %17 = math.exp %16 : vector<8x1xf32>
    %cst_11 = arith.constant 1.000000e+00 : f32
    %18 = vector.broadcast %cst_11 : f32 to vector<8x1xf32>
    %19 = arith.addf %18, %17 : vector<8x1xf32>
    %20 = arith.divf %18, %19 : vector<8x1xf32>
    %c0_12 = arith.constant 0 : index
    %c0_13 = arith.constant 0 : index
    %21 = vector.load %arg6[%c0_12, %c0_13] : memref<8x1xf32, #tpu.memory_space<vmem>>, vector<8x1xf32>
    tpu.vector_store %arg6[%c0_12, %c0_13], %20 {strides = array<i32>} : memref<8x1xf32, #tpu.memory_space<vmem>>, vector<8x1xf32>,
    return
  }
  func.func @transform_0(%arg0: i32) -> (i32, i32) {
    %c0_i32 = arith.constant 0 : i32
    %c0_i32_0 = arith.constant 0 : i32
    return %arg0, %c0_i32 : i32, i32
  }
  func.func @transform_1(%arg0: i32) -> (i32, i32) {
    %c0_i32 = arith.constant 0 : i32
    %c0_i32_0 = arith.constant 0 : i32
    %c0_i32_1 = arith.constant 0 : i32
    return %c0_i32, %c0_i32_0 : i32, i32
  }
  func.func @transform_2(%arg0: i32) -> (i32, i32) {
    %c0_i32 = arith.constant 0 : i32
    %c0_i32_0 = arith.constant 0 : i32
    %c0_i32_1 = arith.constant 0 : i32
    return %c0_i32, %c0_i32_0 : i32, i32
  }
  func.func @transform_3(%arg0: i32) -> (i32, i32) {
    %c0_i32 = arith.constant 0 : i32
    %c0_i32_0 = arith.constant 0 : i32
    %c0_i32_1 = arith.constant 0 : i32
    return %c0_i32, %c0_i32_0 : i32, i32
  }
  func.func @transform_4(%arg0: i32) -> (i32, i32) {
    %c0_i32 = arith.constant 0 : i32
    %c0_i32_0 = arith.constant 0 : i32
    %c0_i32_1 = arith.constant 0 : i32
    return %c0_i32, %c0_i32_0 : i32, i32
  }
  func.func @transform_5(%arg0: i32) -> (i32, i32) {
    %c0_i32 = arith.constant 0 : i32
    %c0_i32_0 = arith.constant 0 : i32
    return %arg0, %c0_i32 : i32, i32
  }
}

</mosaic_0001>

<llo_original>
// kernel: n2_layer_perceptron.1
$region0: #{n2_layer_perceptron.1}
  #allocation0 [shape = 'u32[]', space=smem, size = 0x4, offset = 0x4, fixed_abs, tag = 'smem constant byte address 0x4 - core index']
  #allocation1 [shape = 'u32[144,128]{1,0:T(1,128)}', space=vmem, size = 0x12000, scoped, tag = 'internal scratch']
  #allocation2 [shape = 'f32[1,1]{1,0:T(1,128)S(1)}', space=vmem, size = 0x200, scoped, tag = 'scoped memory for n2_layer_perceptron.1']
  %s0 = inlined_call_operand.vmem [shape: f32[8,2], index: 0, kind: input, shape index: {}]
  %s1 = inlined_call_operand.vmem [shape: f32[2,3], index: 1, kind: input, shape index: {}]
  %s2 = inlined_call_operand.vmem [shape: f32[1,3], index: 2, kind: input, shape index: {}]
  %s3 = inlined_call_operand.vmem [shape: f32[3,1], index: 3, kind: input, shape index: {}]
  %s4 = inlined_call_operand.<no memory space> [shape: f32[1,1], index: 4, kind: input, shape index: {}]
  %s5 = inlined_call_operand.vmem [shape: f32[8,1], index: 5, kind: output, shape index: {}]
  %s6 = sld [smem:[#allocation0]]
  $region30: #{n2_layer_perceptron.1} parent=0
    _
  %s8 = ssub.s32 1, %s6
  %s9 = scalar_select 0, %s8, %s6
  %v10 = vstv %s4
  %11 = vst [vmem:[#allocation2] sm:$0x1] %v10
  // Predicated region
  $region2: #{n2_layer_perceptron.1} parent=0 // pred_check
    _
  $region3: #{n2_layer_perceptron.1} parent=0 // pred_check_branch
    %13 = sbr.rel (0) target = $region5
  $region4: #{n2_layer_perceptron.1} parent=0 // pred_region
    _
  $region5: #{n2_layer_perceptron.1} parent=0 // pred_fallthru
    _
  // Predicated region
  $region6: #{n2_layer_perceptron.1} parent=0 // pred_check
    _
  $region7: #{n2_layer_perceptron.1} parent=0 // pred_check_branch
    %15 = sbr.rel (0) target = $region9
  $region8: #{n2_layer_perceptron.1} parent=0 // pred_region
    _
  $region9: #{n2_layer_perceptron.1} parent=0 // pred_fallthru
    _
  // Predicated region
  $region10: #{n2_layer_perceptron.1} parent=0 // pred_check
    _
  $region11: #{n2_layer_perceptron.1} parent=0 // pred_check_branch
    %17 = sbr.rel (0) target = $region13
  $region12: #{n2_layer_perceptron.1} parent=0 // pred_region
    _
  $region13: #{n2_layer_perceptron.1} parent=0 // pred_fallthru
    _
  // Predicated region
  $region14: #{n2_layer_perceptron.1} parent=0 // pred_check
    _
  $region15: #{n2_layer_perceptron.1} parent=0 // pred_check_branch
    %19 = sbr.rel (0) target = $region17
  $region16: #{n2_layer_perceptron.1} parent=0 // pred_region
    _
  $region17: #{n2_layer_perceptron.1} parent=0 // pred_fallthru
    _
  // Predicated region
  $region18: #{n2_layer_perceptron.1} parent=0 // pred_check
    _
  $region19: #{n2_layer_perceptron.1} parent=0 // pred_check_branch
    %21 = sbr.rel (0) target = $region21
  $region20: #{n2_layer_perceptron.1} parent=0 // pred_region
    _
  $region21: #{n2_layer_perceptron.1} parent=0 // pred_fallthru
    _
  %v22 = vld [vmem:[%s0] sm:$0xff]
  %v23 = vld [vmem:[%s1] sm:$0x3]
  %v24 = vld [vmem:[%s2] sm:$0x1]
  %v26 = vlaneseq
  %v27 = vshrl.u32 %v26, 7
  %v28 = vsub.s32 0, %v27
  %v29 = vrot.slane %v24, %v28
  %vm31 = vcmask 15360
  %v33 = vsel %vm31, %v22, 0
  %vm35 = vcmask 1041408
  %v37 = vsel %vm35, %v23, 0
  %39 = vmatprep.subr.mxu0 0.0
  %40 = vmatpush1.msra.mxu0 %v37
  %41 = vmatprep.subr.mxu0 0.0
  %42 = vmatpush1.msra.mxu0 0.0
  %43 = vmatprep.subr.mxu0 0.0
  %44 = vmatpush1.msra.mxu0 0.0
  %45 = vmatprep.subr.mxu0 0.0
  %46 = vmatpush1.msra.mxu0 0.0
  %47 = vmatprep.subr.mxu0 0.0
  %48 = vmatpush1.msra.mxu0 0.0
  %49 = vmatprep.subr.mxu0 0.0
  %50 = vmatpush1.msra.mxu0 0.0
  %51 = vmatprep.subr.mxu0 0.0
  %52 = vmatpush1.msra.mxu0 0.0
  %53 = vmatprep.subr.mxu0 0.0
  %54 = vmatpush1.msra.mxu0 0.0
  %55 = vmatprep.subr.mxu0 0.0
  %56 = vmatpush1.msra.mxu0 0.0
  %57 = vmatprep.subr.mxu0 0.0
  %58 = vmatpush1.msra.mxu0 0.0
  %59 = vmatprep.subr.mxu0 0.0
  %60 = vmatpush1.msra.mxu0 0.0
  %61 = vmatprep.subr.mxu0 0.0
  %62 = vmatpush1.msra.mxu0 0.0
  %63 = vmatprep.subr.mxu0 0.0
  %64 = vmatpush1.msra.mxu0 0.0
  %65 = vmatprep.subr.mxu0 0.0
  %66 = vmatpush1.msra.mxu0 0.0
  %67 = vmatprep.subr.mxu0 0.0
  %68 = vmatpush1.msra.mxu0 0.0
  %69 = vmatprep.subr.mxu0 0.0
  %70 = vmatpush1.msra.mxu0 0.0
  %71 = vmatprep.subr.mxu0 0.0
  %72 = vmatpush1.msra.mxu0 0.0
  %73 = vmatprep.subr.mxu0 0.0
  %74 = vmatpush1.msra.mxu0 0.0
  %75 = vmatprep.subr.mxu0 0.0
  %76 = vmatpush1.msra.mxu0 0.0
  %77 = vmatprep.subr.mxu0 0.0
  %78 = vmatpush1.msra.mxu0 0.0
  %79 = vmatprep.subr.mxu0 0.0
  %80 = vmatpush1.msra.mxu0 0.0
  %81 = vmatprep.subr.mxu0 0.0
  %82 = vmatpush1.msra.mxu0 0.0
  %83 = vmatprep.subr.mxu0 0.0
  %84 = vmatpush1.msra.mxu0 0.0
  %85 = vmatprep.subr.mxu0 0.0
  %86 = vmatpush1.msra.mxu0 0.0
  %87 = vmatprep.subr.mxu0 0.0
  %88 = vmatpush1.msra.mxu0 0.0
  %89 = vmatprep.subr.mxu0 0.0
  %90 = vmatpush1.msra.mxu0 0.0
  %91 = vmatprep.subr.mxu0 0.0
  %92 = vmatpush1.msra.mxu0 0.0
  %93 = vmatprep.subr.mxu0 0.0
  %94 = vmatpush1.msra.mxu0 0.0
  %95 = vmatprep.subr.mxu0 0.0
  %96 = vmatpush1.msra.mxu0 0.0
  %97 = vmatprep.subr.mxu0 0.0
  %98 = vmatpush1.msra.mxu0 0.0
  %99 = vmatprep.subr.mxu0 0.0
  %100 = vmatpush1.msra.mxu0 0.0
  %101 = vmatprep.subr.mxu0 0.0
  %102 = vmatpush1.msra.mxu0 0.0
  %103 = vmatprep.mubr.f32.mxu0 0.0
  %104 = vmatmul.mubr.f32.gmra.mrb[0].mxu0 %v33
  %v105 = vpop.f32.mrb[0].mxu0
  %v106 = vadd.f32 %v29, %v105
  %v107 = vpop.f32.mrb[0].mxu0
  %108 = vdwg.mxu0
  %v109 = vxor.u32 %v106, 2147483648
  %v110 = vmul.f32 %v109, 1.442695
  %v111 = vpow.pop %v110
  %v112 = vadd.f32 %v111, 1.0
  %v113 = vrcp.pop %v112
  %v114 = vmul.f32 1.0, %v113
  %v115 = vld [vmem:[%s3] sm:$0x7]
  %v116 = vld [vmem:[#allocation2] sm:$0x1]
  %v118 = vlaneseq
  %v119 = vshrl.u32 %v118, 7
  %v120 = vsub.s32 0, %v119
  %v121 = vrot.slane %v116, %v120
  %vm123 = vcmask 23552
  %v125 = vsel %vm123, %v114, 0
  %vm127 = vcmask 1042432
  %v129 = vsel %vm127, %v115, 0
  %131 = vmatprep.subr.mxu0 0.0
  %132 = vmatpush1.msra.mxu0 %v129
  %133 = vmatprep.subr.mxu0 0.0
  %134 = vmatpush1.msra.mxu0 0.0
  %135 = vmatprep.subr.mxu0 0.0
  %136 = vmatpush1.msra.mxu0 0.0
  %137 = vmatprep.subr.mxu0 0.0
  %138 = vmatpush1.msra.mxu0 0.0
  %139 = vmatprep.subr.mxu0 0.0
  %140 = vmatpush1.msra.mxu0 0.0
  %141 = vmatprep.subr.mxu0 0.0
  %142 = vmatpush1.msra.mxu0 0.0
  %143 = vmatprep.subr.mxu0 0.0
  %144 = vmatpush1.msra.mxu0 0.0
  %145 = vmatprep.subr.mxu0 0.0
  %146 = vmatpush1.msra.mxu0 0.0
  %147 = vmatprep.subr.mxu0 0.0
  %148 = vmatpush1.msra.mxu0 0.0
  %149 = vmatprep.subr.mxu0 0.0
  %150 = vmatpush1.msra.mxu0 0.0
  %151 = vmatprep.subr.mxu0 0.0
  %152 = vmatpush1.msra.mxu0 0.0
  %153 = vmatprep.subr.mxu0 0.0
  %154 = vmatpush1.msra.mxu0 0.0
  %155 = vmatprep.subr.mxu0 0.0
  %156 = vmatpush1.msra.mxu0 0.0
  %157 = vmatprep.subr.mxu0 0.0
  %158 = vmatpush1.msra.mxu0 0.0
  %159 = vmatprep.subr.mxu0 0.0
  %160 = vmatpush1.msra.mxu0 0.0
  %161 = vmatprep.subr.mxu0 0.0
  %162 = vmatpush1.msra.mxu0 0.0
  %163 = vmatprep.subr.mxu0 0.0
  %164 = vmatpush1.msra.mxu0 0.0
  %165 = vmatprep.subr.mxu0 0.0
  %166 = vmatpush1.msra.mxu0 0.0
  %167 = vmatprep.subr.mxu0 0.0
  %168 = vmatpush1.msra.mxu0 0.0
  %169 = vmatprep.subr.mxu0 0.0
  %170 = vmatpush1.msra.mxu0 0.0
  %171 = vmatprep.subr.mxu0 0.0
  %172 = vmatpush1.msra.mxu0 0.0
  %173 = vmatprep.subr.mxu0 0.0
  %174 = vmatpush1.msra.mxu0 0.0
  %175 = vmatprep.subr.mxu0 0.0
  %176 = vmatpush1.msra.mxu0 0.0
  %177 = vmatprep.subr.mxu0 0.0
  %178 = vmatpush1.msra.mxu0 0.0
  %179 = vmatprep.subr.mxu0 0.0
  %180 = vmatpush1.msra.mxu0 0.0
  %181 = vmatprep.subr.mxu0 0.0
  %182 = vmatpush1.msra.mxu0 0.0
  %183 = vmatprep.subr.mxu0 0.0
  %184 = vmatpush1.msra.mxu0 0.0
  %185 = vmatprep.subr.mxu0 0.0
  %186 = vmatpush1.msra.mxu0 0.0
  %187 = vmatprep.subr.mxu0 0.0
  %188 = vmatpush1.msra.mxu0 0.0
  %189 = vmatprep.subr.mxu0 0.0
  %190 = vmatpush1.msra.mxu0 0.0
  %191 = vmatprep.subr.mxu0 0.0
  %192 = vmatpush1.msra.mxu0 0.0
  %193 = vmatprep.subr.mxu0 0.0
  %194 = vmatpush1.msra.mxu0 0.0
  %195 = vmatprep.mubr.f32.mxu0 0.0
  %196 = vmatmul.mubr.f32.gmra.mrb[0].mxu0 %v125
  %v197 = vpop.f32.mrb[0].mxu0
  %v198 = vadd.f32 %v121, %v197
  %v199 = vpop.f32.mrb[0].mxu0
  %200 = vdwg.mxu0
  %v201 = vxor.u32 %v198, 2147483648
  %v202 = vmul.f32 %v201, 1.442695
  %v203 = vpow.pop %v202
  %v204 = vadd.f32 %v203, 1.0
  %v205 = vrcp.pop %v204
  %v206 = vmul.f32 1.0, %v205
  %vm207 = vcmask 7168
  %208 = vst.msk [vmem:[%s5] sm:$0xff] %vm207, %v206
  // Predicated region
  $region22: #{n2_layer_perceptron.1} parent=0 // pred_check
    _
  $region23: #{n2_layer_perceptron.1} parent=0 // pred_check_branch
    %210 = sbr.rel (0) target = $region25
  $region24: #{n2_layer_perceptron.1} parent=0 // pred_region
    _
  $region25: #{n2_layer_perceptron.1} parent=0 // pred_fallthru
    _
  // Predicated region
  $region26: #{n2_layer_perceptron.1} parent=0 // pred_check
    _
  $region27: #{n2_layer_perceptron.1} parent=0 // pred_check_branch
    %212 = sbr.rel (0) target = $region29
  $region28: #{n2_layer_perceptron.1} parent=0 // pred_region
    _
  $region29: #{n2_layer_perceptron.1} parent=0 // pred_fallthru
    _

</llo_original>
